<compile_context>
chip_gen: v7x
topology: tpu7x:2x2x1
jax: 0.10.0
libtpu: 0.0.40
codegen_flags: <defaults>
</compile_context>

<pallas_src>
import jax
import jax.numpy as jnp
from jax.experimental import pallas as pl
from jax.experimental.pallas import tpu as pltpu


# ---------------------------------------------------------------------------
# Kernels
# ---------------------------------------------------------------------------

def _ce_hard_kernel(logits_ref, label_ref, out_ref):
    """Per-row CE with integer class targets.

    logits_ref: (TN, C) any float dtype     label_ref: (TN, 1) int32
    out_ref:    (TN, 1) float32 per-row loss
    """
    logits = logits_ref[...].astype(jnp.float32)                   # (TN, C)
    label = label_ref[...]                                         # (TN, 1) int32

    m = jnp.max(logits, axis=-1, keepdims=True)                    # (TN, 1)
    lse = jnp.log(jnp.sum(jnp.exp(logits - m), axis=-1, keepdims=True))

    # Gather the target logit via a lane-index compare (no one-hot matrix).
    col = jax.lax.broadcasted_iota(jnp.int32, logits.shape, 1)     # (TN, C)
    picked = jnp.sum(jnp.where(col == label, logits, 0.0),
                     axis=-1, keepdims=True)                       # (TN, 1)

    # -log_softmax(logits)[label] = (m + lse) - logits[label]
    out_ref[...] = (m + lse) - picked


def _ce_soft_kernel(logits_ref, labels_ref, out_ref):
    """Per-row CE with soft (probability) targets.

    logits_ref: (TN, C), labels_ref: (TN, C), out_ref: (TN, 1) float32.
    """
    logits = logits_ref[...].astype(jnp.float32)
    labels = labels_ref[...].astype(jnp.float32)

    m = jnp.max(logits, axis=-1, keepdims=True)
    lse = jnp.log(jnp.sum(jnp.exp(logits - m), axis=-1, keepdims=True))

    # -sum_c labels * (logits - m - lse)
    #   = (m + lse) * sum_c labels - sum_c labels * logits
    label_sum = jnp.sum(labels, axis=-1, keepdims=True)
    dot = jnp.sum(labels * logits, axis=-1, keepdims=True)
    out_ref[...] = (m + lse) * label_sum - dot


# ---------------------------------------------------------------------------
# Tiling / pallas_call plumbing
# ---------------------------------------------------------------------------

# Conservative budget for the double-buffered big input streams: fits even the
# v5e 16 MiB scoped-VMEM default with headroom (and v7x's smaller physical VMEM).
_VMEM_BUDGET_BYTES = 12 * 1024 * 1024


def _choose_tile_rows(n, bytes_per_row):
    """Largest row tile (<=512, multiple of 8) whose double-buffered streams fit."""
    max_rows = max(8, _VMEM_BUDGET_BYTES // (2 * max(int(bytes_per_row), 1)))
    tile = min(512, max_rows)
    tile = max(8, (tile // 8) * 8)
    if n <= tile:
        return n  # single full-extent block is always a legal block shape
    return tile


def _per_row_loss_hard(logits, label_idx, tile_rows=None):
    n, c = logits.shape
    tn = tile_rows if tile_rows is not None else _choose_tile_rows(
        n, c * logits.dtype.itemsize)
    grid = (pl.cdiv(n, tn),)
    return pl.pallas_call(
        _ce_hard_kernel,
        out_shape=jax.ShapeDtypeStruct((n, 1), jnp.float32),
        grid=grid,
        in_specs=[
            pl.BlockSpec((tn, c), lambda i: (i, 0)),
            pl.BlockSpec((tn, 1), lambda i: (i, 0)),
        ],
        out_specs=pl.BlockSpec((tn, 1), lambda i: (i, 0)),
        compiler_params=pltpu.CompilerParams(
            dimension_semantics=("parallel",)),
        cost_estimate=pl.CostEstimate(
            flops=5 * n * c,
            transcendentals=n * c,
            bytes_accessed=n * c * logits.dtype.itemsize + 8 * n,
        ),
    )(logits, label_idx)


def _per_row_loss_soft(logits, labels, tile_rows=None):
    n, c = logits.shape
    tn = tile_rows if tile_rows is not None else _choose_tile_rows(
        n, c * (logits.dtype.itemsize + labels.dtype.itemsize))
    grid = (pl.cdiv(n, tn),)
    return pl.pallas_call(
        _ce_soft_kernel,
        out_shape=jax.ShapeDtypeStruct((n, 1), jnp.float32),
        grid=grid,
        in_specs=[
            pl.BlockSpec((tn, c), lambda i: (i, 0)),
            pl.BlockSpec((tn, c), lambda i: (i, 0)),
        ],
        out_specs=pl.BlockSpec((tn, 1), lambda i: (i, 0)),
        compiler_params=pltpu.CompilerParams(
            dimension_semantics=("parallel",)),
        cost_estimate=pl.CostEstimate(
            flops=7 * n * c,
            transcendentals=n * c,
            bytes_accessed=n * c * (logits.dtype.itemsize
                                    + labels.dtype.itemsize) + 4 * n,
        ),
    )(logits, labels)


# ---------------------------------------------------------------------------
# Public wrapper (mirrors CE_loss.forward)
# ---------------------------------------------------------------------------

def ce_loss(outputs, labels=None, *, tile_rows=None):
    """Mimics CE_loss.forward.

    outputs: (N, C) float logits (f32 or bf16; kept in input dtype in HBM/VMEM).
    labels:  None  -> module default: torch.eye(class_num) targets.  The target
                      class of row r is simply r, so no eye matrix is built or
                      streamed (requires N == class_num).
             int   -> class indices (N,) -> in-kernel gather, no one-hot in HBM.
             float -> soft probability targets of shape (N, C).
    Returns a scalar float32 loss (batch mean).
    """
    outputs = jnp.asarray(outputs)
    if outputs.ndim != 2:
        raise ValueError("outputs must be (N, C)")
    n, c = outputs.shape

    if labels is None:
        # self.labels = torch.eye(args.class_num): row r's target class is r.
        if n != c:
            raise ValueError(
                "labels=None (eye(class_num) targets) requires N == class_num")
        label_idx = jnp.arange(n, dtype=jnp.int32).reshape(n, 1)
        per_row = _per_row_loss_hard(outputs, label_idx, tile_rows)
    else:
        labels = jnp.asarray(labels)
        if jnp.issubdtype(labels.dtype, jnp.integer):
            label_idx = labels.reshape(n, 1).astype(jnp.int32)
            per_row = _per_row_loss_hard(outputs, label_idx, tile_rows)
        else:
            per_row = _per_row_loss_soft(outputs, labels, tile_rows)

    # Finalize: mean over the true N (multiply once by precomputed 1/N).
    return jnp.sum(per_row) * jnp.float32(1.0 / n)


# ---------------------------------------------------------------------------
# Pure-JAX reference (for correctness check)
# ---------------------------------------------------------------------------

def ce_loss_ref(outputs, labels=None):
    outputs = jnp.asarray(outputs).astype(jnp.float32)
    n, c = outputs.shape
    if labels is None:
        labels = jnp.eye(c, dtype=jnp.float32)
    else:
        labels = jnp.asarray(labels)
        if jnp.issubdtype(labels.dtype, jnp.integer):
            labels = jax.nn.one_hot(labels, c, dtype=jnp.float32)
        labels = labels.astype(jnp.float32)
    logp = jax.nn.log_softmax(outputs, axis=-1)
    return -jnp.mean(jnp.sum(labels * logp, axis=-1))


# ---------------------------------------------------------------------------
# Demo / smoke test
# ---------------------------------------------------------------------------

if __name__ == "__main__":
    class_num = 8  # args.class_num
    key = jax.random.PRNGKey(0)

    # Default path: labels=None -> targets are eye(class_num); outputs must be
    # (class_num, class_num), matching the PyTorch module's implied usage.
    outputs = jax.random.normal(key, (class_num, class_num), dtype=jnp.float32)

    loss_none = ce_loss(outputs, labels=None)
    jax.block_until_ready(loss_none)
    assert jnp.allclose(loss_none, ce_loss_ref(outputs, None),
                        rtol=1e-5, atol=1e-5)

    # Integer (hard) labels path.
    k2 = jax.random.fold_in(key, 1)
    int_labels = jax.random.randint(k2, (class_num,), 0, class_num)
    loss_hard = ce_loss(outputs, int_labels)
    jax.block_until_ready(loss_hard)
    assert jnp.allclose(loss_hard, ce_loss_ref(outputs, int_labels),
                        rtol=1e-5, atol=1e-5)

    # Soft (probability) labels path.
    k3 = jax.random.fold_in(key, 2)
    soft_labels = jax.nn.softmax(
        jax.random.normal(k3, (class_num, class_num), dtype=jnp.float32), axis=-1)
    loss_soft = ce_loss(outputs, soft_labels)
    jax.block_until_ready(loss_soft)
    assert jnp.allclose(loss_soft, ce_loss_ref(outputs, soft_labels),
                        rtol=1e-5, atol=1e-5)

    # Larger case exercising a multi-step grid with a ragged last row tile.
    n_big, c_big = 40, 24
    k4 = jax.random.fold_in(key, 3)
    outputs_big = jax.random.normal(k4, (n_big, c_big), dtype=jnp.float32)
    k5 = jax.random.fold_in(key, 4)
    labels_big = jax.random.randint(k5, (n_big,), 0, c_big)
    loss_big = ce_loss(outputs_big, labels_big, tile_rows=16)  # grid=(3,), ragged
    jax.block_until_ready(loss_big)
    assert jnp.allclose(loss_big, ce_loss_ref(outputs_big, labels_big),
                        rtol=1e-5, atol=1e-5)

    print("KERNEL_OK")
</pallas_src>

<mosaic_0001>
module attributes {stable_mosaic.version = 11 : i64} {
  func.func @_ce_hard_kernel(%arg0: i32, %arg1: memref<8x8xf32, #tpu.memory_space<vmem>>, %arg2: memref<8x1xi32, #tpu.memory_space<vmem>>, %arg3: memref<8x1xf32, #tpu.memory_space<vmem>>) attributes {dimension_semantics = [#tpu.dimension_semantics<parallel>], iteration_bounds = array<i64: 1>, scalar_prefetch = 0 : i64, scratch_operands = 0 : i64, tpu.core_type = #tpu.core_type<tc>, window_params = [{transform_indices = @transform_0, window_bounds = array<i64: 8, 8>}, {transform_indices = @transform_1, window_bounds = array<i64: 8, 1>}, {transform_indices = @transform_2, window_bounds = array<i64: 8, 1>}]} {
    %c0 = arith.constant 0 : index
    %c0_0 = arith.constant 0 : index
    %0 = vector.load %arg1[%c0, %c0_0] : memref<8x8xf32, #tpu.memory_space<vmem>>, vector<8x8xf32>
    %c0_1 = arith.constant 0 : index
    %c0_2 = arith.constant 0 : index
    %1 = vector.load %arg2[%c0_1, %c0_2] : memref<8x1xi32, #tpu.memory_space<vmem>>, vector<8x1xi32>
    %cst = arith.constant dense<0xFF800000> : vector<8xf32>
    %2 = vector.multi_reduction <maximumf>, %0, %cst [1] : vector<8x8xf32> to vector<8xf32>
    %3 = vector.shape_cast %2 : vector<8xf32> to vector<8x1xf32>
    %4 = vector.broadcast %3 : vector<8x1xf32> to vector<8x8xf32>
    %5 = arith.subf %0, %4 : vector<8x8xf32>
    %6 = math.exp %5 : vector<8x8xf32>
    %cst_3 = arith.constant dense<0.000000e+00> : vector<8xf32>
    %7 = vector.multi_reduction <add>, %6, %cst_3 [1] : vector<8x8xf32> to vector<8xf32>
    %8 = vector.shape_cast %7 : vector<8xf32> to vector<8x1xf32>
    %9 = math.log %8 : vector<8x1xf32>
    %10 = tpu.iota {dimensions = array<i32: 1>} : vector<8x8xi32>
    %11 = vector.broadcast %1 : vector<8x1xi32> to vector<8x8xi32>
    %12 = arith.cmpi eq, %10, %11 : vector<8x8xi32>
    %cst_4 = arith.constant 0.000000e+00 : f32
    %13 = vector.broadcast %cst_4 : f32 to vector<8x8xf32>
    %14 = arith.select %12, %0, %13 : vector<8x8xi1>, vector<8x8xf32>
    %cst_5 = arith.constant dense<0.000000e+00> : vector<8xf32>
    %15 = vector.multi_reduction <add>, %14, %cst_5 [1] : vector<8x8xf32> to vector<8xf32>
    %16 = vector.shape_cast %15 : vector<8xf32> to vector<8x1xf32>
    %17 = arith.addf %3, %9 : vector<8x1xf32>
    %18 = arith.subf %17, %16 : vector<8x1xf32>
    %c0_6 = arith.constant 0 : index
    %c0_7 = arith.constant 0 : index
    %19 = vector.load %arg3[%c0_6, %c0_7] : memref<8x1xf32, #tpu.memory_space<vmem>>, vector<8x1xf32>
    tpu.vector_store %arg3[%c0_6, %c0_7], %18 {strides = array<i32>} : memref<8x1xf32, #tpu.memory_space<vmem>>, vector<8x1xf32>,
    return
  }
  func.func @transform_0(%arg0: i32) -> (i32, i32) {
    %c0_i32 = arith.constant 0 : i32
    %c0_i32_0 = arith.constant 0 : i32
    return %arg0, %c0_i32 : i32, i32
  }
  func.func @transform_1(%arg0: i32) -> (i32, i32) {
    %c0_i32 = arith.constant 0 : i32
    %c0_i32_0 = arith.constant 0 : i32
    return %arg0, %c0_i32 : i32, i32
  }
  func.func @transform_2(%arg0: i32) -> (i32, i32) {
    %c0_i32 = arith.constant 0 : i32
    %c0_i32_0 = arith.constant 0 : i32
    return %arg0, %c0_i32 : i32, i32
  }
}

</mosaic_0001>

<llo_original>
// kernel: tpu_custom_call.1
$region0: #{tpu_custom_call.1}
  #allocation0 [shape = 'u32[]', space=smem, size = 0x4, offset = 0x4, fixed_abs, tag = 'smem constant byte address 0x4 - core index']
  #allocation1 [shape = 'u32[144,128]{1,0:T(1,128)}', space=vmem, size = 0x12000, scoped, tag = 'internal scratch']
  %s0 = inlined_call_operand.vmem [shape: f32[8,8], index: 0, kind: input, shape index: {}]
  %s1 = inlined_call_operand.vmem [shape: s32[8,1], index: 1, kind: input, shape index: {}]
  %s2 = inlined_call_operand.vmem [shape: f32[8,1], index: 2, kind: output, shape index: {}]
  %s3 = sld [smem:[#allocation0]]
  $region18: #{tpu_custom_call.1} parent=0
    _
  %s5 = ssub.s32 1, %s3
  %s6 = scalar_select 0, %s5, %s3
  // Predicated region
  $region2: #{tpu_custom_call.1} parent=0 // pred_check
    _
  $region3: #{tpu_custom_call.1} parent=0 // pred_check_branch
    %8 = sbr.rel (0) target = $region5
  $region4: #{tpu_custom_call.1} parent=0 // pred_region
    _
  $region5: #{tpu_custom_call.1} parent=0 // pred_fallthru
    _
  // Predicated region
  $region6: #{tpu_custom_call.1} parent=0 // pred_check
    _
  $region7: #{tpu_custom_call.1} parent=0 // pred_check_branch
    %10 = sbr.rel (0) target = $region9
  $region8: #{tpu_custom_call.1} parent=0 // pred_region
    _
  $region9: #{tpu_custom_call.1} parent=0 // pred_fallthru
    _
  %v11 = vld [vmem:[%s0] sm:$0xff]
  %v12 = vld [vmem:[%s1] sm:$0xff]
  %vm13 = vcmask 64512
  %v14 = vsel %vm13, %v11, -inf
  %15 = vmax.xlane.f32.xlu0 %v14
  %v16 = vpop.xlane.xlu0 %15
  %v17 = vsub.f32 %v11, %v16
  %v18 = vmul.f32 %v17, 1.442695
  %v19 = vpow.pop %v18
  %v20 = vsel %vm13, %v19, 0.0
  %21 = vadd.xlane.f32.xlu0 %v20
  %v22 = vpop.xlane.xlu0 %21
  %v23 = vlog2.pop %v22
  %v24 = vmul.f32 %v23, 0.6931472
  %v25 = vlaneseq
  %v26 = vand.u32 %v25, 127
  %27 = vset.pattern.permute.xlu0 0
  %28 = vperm.xlu0 %27, %v12
  %v29 = vpop.permute.xlu0 %28
  %vm30 = vcmp.eq.s32.totalorder %v26, %v29
  %v31 = vsel %vm30, %v11, 0.0
  %v32 = vsel %vm13, %v31, 0.0
  %33 = vadd.xlane.f32.xlu0 %v32
  %v34 = vpop.xlane.xlu0 %33
  %v35 = vadd.f32 %v16, %v24
  %v36 = vsub.f32 %v35, %v34
  %vm37 = vcmask 7168
  %38 = vst.msk [vmem:[%s2] sm:$0xff] %vm37, %v36
  // Predicated region
  $region10: #{tpu_custom_call.1} parent=0 // pred_check
    _
  $region11: #{tpu_custom_call.1} parent=0 // pred_check_branch
    %40 = sbr.rel (0) target = $region13
  $region12: #{tpu_custom_call.1} parent=0 // pred_region
    _
  $region13: #{tpu_custom_call.1} parent=0 // pred_fallthru
    _
  // Predicated region
  $region14: #{tpu_custom_call.1} parent=0 // pred_check
    _
  $region15: #{tpu_custom_call.1} parent=0 // pred_check_branch
    %42 = sbr.rel (0) target = $region17
  $region16: #{tpu_custom_call.1} parent=0 // pred_region
    _
  $region17: #{tpu_custom_call.1} parent=0 // pred_fallthru
    _

</llo_original>
